<compile_context>
chip_gen: v5e
topology: v5e:2x2
jax: 0.10.0
libtpu: 0.0.40
codegen_flags: <defaults>
</compile_context>

<pallas_src>
import functools

import jax
import jax.numpy as jnp
from jax.experimental import pallas as pl
from jax.experimental.pallas import tpu as pltpu


def _round_up(x: int, m: int) -> int:
    return ((x + m - 1) // m) * m


_VMEM_LIMIT_BYTES = 32 * 1024 * 1024  # safe on v5e/v6e/v7x, fits default tiles


# ----------------------------- kernels -------------------------------------


def _linear_kernel_k1(x_ref, wt_ref, b_ref, o_ref):
    """Single-K-step path: one MXU dot + bias, no init / accumulate passes."""
    o_ref[...] = (
        jnp.dot(x_ref[...], wt_ref[...], preferred_element_type=jnp.float32)
        + b_ref[...].astype(jnp.float32)
    ).astype(o_ref.dtype)


def _linear_kernel_f32(x_ref, wt_ref, b_ref, o_ref):
    """Multi-K path, f32 output: accumulate directly into the resident
    output block (no scratch, no finalize copy)."""
    k = pl.program_id(2)

    @pl.when(k == 0)
    def _():
        o_ref[...] = jnp.zeros_like(o_ref)

    o_ref[...] += jnp.dot(
        x_ref[...], wt_ref[...], preferred_element_type=jnp.float32
    )

    @pl.when(k == pl.num_programs(2) - 1)
    def _():
        o_ref[...] += b_ref[...]


def _linear_kernel_acc(x_ref, wt_ref, b_ref, o_ref, acc_ref):
    """Multi-K path for non-f32 outputs: f32 scratch accumulator, single
    cast + bias add at finalize."""
    k = pl.program_id(2)

    @pl.when(k == 0)
    def _():
        acc_ref[...] = jnp.zeros_like(acc_ref)

    acc_ref[...] += jnp.dot(
        x_ref[...], wt_ref[...], preferred_element_type=jnp.float32
    )

    @pl.when(k == pl.num_programs(2) - 1)
    def _():
        o_ref[...] = (acc_ref[...] + b_ref[...].astype(jnp.float32)).astype(
            o_ref.dtype
        )


# ----------------------------- forward --------------------------------------


@functools.partial(jax.jit, static_argnames=("d_out", "tm", "tn", "tk"))
def _linear_forward_padded(x, wt_p, b_p, *, d_out, tm, tn, tk):
    """x: (B, D_in); wt_p: (Kp, Np) pre-transposed+padded; b_p: (1, Np)."""
    B, D_in = x.shape
    Kp, Np = wt_p.shape

    # M tile clamps to the (sublane-aligned) batch; tn/tk were fixed at init.
    tm = min(tm, _round_up(B, 8))
    Bp = _round_up(B, tm)

    # Only the activations are padded per call (weights were padded once).
    x_p = jnp.pad(x, ((0, Bp - B), (0, Kp - D_in)))

    m_blocks = Bp // tm
    n_blocks = Np // tn
    k_blocks = Kp // tk

    if k_blocks == 1:
        # Fast path: whole contraction in one step, no accumulator.
        out_p = pl.pallas_call(
            _linear_kernel_k1,
            out_shape=jax.ShapeDtypeStruct((Bp, Np), x.dtype),
            grid_spec=pltpu.PrefetchScalarGridSpec(
                num_scalar_prefetch=0,
                grid=(m_blocks, n_blocks),
                in_specs=[
                    pl.BlockSpec((tm, tk), lambda i, j: (i, 0)),
                    pl.BlockSpec((tk, tn), lambda i, j: (0, j)),
                    pl.BlockSpec((1, tn), lambda i, j: (0, j)),
                ],
                out_specs=pl.BlockSpec((tm, tn), lambda i, j: (i, j)),
            ),
            compiler_params=pltpu.CompilerParams(
                dimension_semantics=("parallel", "parallel"),
                vmem_limit_bytes=_VMEM_LIMIT_BYTES,
            ),
        )(x_p, wt_p, b_p)
    else:
        if x.dtype == jnp.float32:
            kernel = _linear_kernel_f32
            scratch_shapes = []
        else:
            kernel = _linear_kernel_acc
            scratch_shapes = [pltpu.VMEM((tm, tn), jnp.float32)]

        out_p = pl.pallas_call(
            kernel,
            out_shape=jax.ShapeDtypeStruct((Bp, Np), x.dtype),
            grid_spec=pltpu.PrefetchScalarGridSpec(
                num_scalar_prefetch=0,
                grid=(m_blocks, n_blocks, k_blocks),
                in_specs=[
                    pl.BlockSpec((tm, tk), lambda i, j, k: (i, k)),
                    pl.BlockSpec((tk, tn), lambda i, j, k: (k, j)),
                    # bias index_map ignores k -> resident across the K loop
                    pl.BlockSpec((1, tn), lambda i, j, k: (0, j)),
                ],
                # Output block index constant along K -> resident accumulator.
                out_specs=pl.BlockSpec((tm, tn), lambda i, j, k: (i, j)),
                scratch_shapes=scratch_shapes,
            ),
            compiler_params=pltpu.CompilerParams(
                dimension_semantics=("parallel", "parallel", "arbitrary"),
                vmem_limit_bytes=_VMEM_LIMIT_BYTES,
            ),
        )(x_p, wt_p, b_p)

    return out_p[:B, :d_out]


class PallasLinear:
    """PyTorch nn.Linear forward (y = x @ W^T + b) on TPU via Pallas.

    Weight is transposed to (D_in, D_out) and zero-padded ONCE at init, so the
    per-call path only pads the activations and launches the kernel.
    """

    def __init__(self, weight, bias, *, tm: int = 512, tn: int = 512, tk: int = 1024):
        d_out, d_in = weight.shape
        self.d_out = int(d_out)

        # Clamp N/K tiles to the (lane-aligned) problem size.
        tn = min(tn, _round_up(d_out, 128))
        tk = min(tk, _round_up(d_in, 128))

        # v7x megacore friendliness: prefer >=2 N blocks when D_out allows it
        # (only matters at small batch where the M axis collapses to 1 block).
        Np = _round_up(d_out, tn)
        while Np // tn < 2 and tn >= 512 and tn % 256 == 0:
            tn //= 2
            Np = _round_up(d_out, tn)

        Kp = _round_up(d_in, tk)

        # One-time transpose + pad (hoisted out of the per-call path).
        # For production weights consider storing this in bf16 (fp8 on v7x).
        wt = jnp.swapaxes(jnp.asarray(weight), 0, 1)  # (D_in, D_out)
        self.wt_p = jnp.pad(wt, ((0, Kp - d_in), (0, Np - d_out)))
        self.b_p = jnp.pad(jnp.asarray(bias), (0, Np - d_out)).reshape(1, Np)

        self.tm, self.tn, self.tk = tm, tn, tk

    def __call__(self, x):
        return _linear_forward_padded(
            x,
            self.wt_p,
            self.b_p,
            d_out=self.d_out,
            tm=self.tm,
            tn=self.tn,
            tk=self.tk,
        )


if __name__ == "__main__":
    # Small shapes consistent with the module: batch=8, input_dim=32, output_dim=16.
    batch, input_dim, output_dim = 8, 32, 16

    key = jax.random.PRNGKey(0)
    kx, kw, kb = jax.random.split(key, 3)

    x = jax.random.normal(kx, (batch, input_dim), dtype=jnp.float32)
    # Mimic nn.Linear's uniform(-1/sqrt(fan_in), 1/sqrt(fan_in)) init.
    bound = 1.0 / jnp.sqrt(jnp.float32(input_dim))
    w = jax.random.uniform(
        kw, (output_dim, input_dim), minval=-bound, maxval=bound, dtype=jnp.float32
    )
    b = jax.random.uniform(
        kb, (output_dim,), minval=-bound, maxval=bound, dtype=jnp.float32
    )

    layer = PallasLinear(w, b)
    y = layer(x)
    jax.block_until_ready(y)

    # Cross-check against plain JAX reference.
    y_ref = x @ w.T + b
    assert y.shape == (batch, output_dim)
    assert jnp.allclose(y, y_ref, atol=1e-5, rtol=1e-5)

    print("KERNEL_OK")
</pallas_src>

<mosaic_0001>
module attributes {stable_mosaic.version = 11 : i64} {
  func.func @_linear_kernel_k1(%arg0: i32, %arg1: i32, %arg2: memref<8x128xf32, #tpu.memory_space<vmem>>, %arg3: memref<128x128xf32, #tpu.memory_space<vmem>>, %arg4: memref<1x128xf32, #tpu.memory_space<vmem>>, %arg5: memref<8x128xf32, #tpu.memory_space<vmem>>) attributes {dimension_semantics = [#tpu.dimension_semantics<parallel>, #tpu.dimension_semantics<parallel>], iteration_bounds = array<i64: 1, 1>, scalar_prefetch = 0 : i64, scratch_operands = 0 : i64, tpu.core_type = #tpu.core_type<tc>, window_params = [{transform_indices = @transform_0, window_bounds = array<i64: 8, 128>}, {transform_indices = @transform_1, window_bounds = array<i64: 128, 128>}, {transform_indices = @transform_2, window_bounds = array<i64: 1, 128>}, {transform_indices = @transform_3, window_bounds = array<i64: 8, 128>}]} {
    %c0 = arith.constant 0 : index
    %c0_0 = arith.constant 0 : index
    %0 = vector.load %arg2[%c0, %c0_0] : memref<8x128xf32, #tpu.memory_space<vmem>>, vector<8x128xf32>
    %c0_1 = arith.constant 0 : index
    %c0_2 = arith.constant 0 : index
    %1 = vector.load %arg3[%c0_1, %c0_2] : memref<128x128xf32, #tpu.memory_space<vmem>>, vector<128x128xf32>
    %cst = arith.constant dense<0.000000e+00> : vector<8x128xf32>
    %2 = tpu.matmul %0, %1, %cst {dimension_numbers = #tpu.dot_dimension_numbers<[1], [0], [0], [1], [0, 0, 1, 1], [], []>} : vector<8x128xf32>, vector<128x128xf32>, vector<8x128xf32> -> vector<8x128xf32>
    %c0_3 = arith.constant 0 : index
    %c0_4 = arith.constant 0 : index
    %3 = vector.load %arg4[%c0_3, %c0_4] : memref<1x128xf32, #tpu.memory_space<vmem>>, vector<1x128xf32>
    %4 = vector.broadcast %3 : vector<1x128xf32> to vector<8x128xf32>
    %5 = arith.addf %2, %4 : vector<8x128xf32>
    %c0_5 = arith.constant 0 : index
    %c0_6 = arith.constant 0 : index
    %6 = vector.load %arg5[%c0_5, %c0_6] : memref<8x128xf32, #tpu.memory_space<vmem>>, vector<8x128xf32>
    tpu.vector_store %arg5[%c0_5, %c0_6], %5 {strides = array<i32>} : memref<8x128xf32, #tpu.memory_space<vmem>>, vector<8x128xf32>,
    return
  }
  func.func @transform_0(%arg0: i32, %arg1: i32) -> (i32, i32) {
    %c0_i32 = arith.constant 0 : i32
    %c0_i32_0 = arith.constant 0 : i32
    return %arg0, %c0_i32 : i32, i32
  }
  func.func @transform_1(%arg0: i32, %arg1: i32) -> (i32, i32) {
    %c0_i32 = arith.constant 0 : i32
    %c0_i32_0 = arith.constant 0 : i32
    return %c0_i32, %arg1 : i32, i32
  }
  func.func @transform_2(%arg0: i32, %arg1: i32) -> (i32, i32) {
    %c0_i32 = arith.constant 0 : i32
    %c0_i32_0 = arith.constant 0 : i32
    return %c0_i32, %arg1 : i32, i32
  }
  func.func @transform_3(%arg0: i32, %arg1: i32) -> (i32, i32) {
    %c0_i32 = arith.constant 0 : i32
    return %arg0, %arg1 : i32, i32
  }
}

</mosaic_0001>

<llo_original>
// kernel: _linear_forward_padded.1
$region0: #{_linear_forward_padded.1}
  #allocation0 [shape = 'u32[]', space=smem, size = 0x4, offset = 0x4, fixed_abs, tag = 'smem constant byte address 0x4 - core index']
  #allocation1 [shape = 'u32[72,128]{1,0:T(1,128)}', space=vmem, size = 0x9000, scoped, tag = 'internal scratch']
  %s0 = inlined_call_operand.vmem [shape: f32[8,128], index: 0, kind: input, shape index: {}]
  %s1 = inlined_call_operand.hbm [shape: f32[128,128], index: 1, kind: input, shape index: {}]
  %s2 = inlined_call_operand.vmem [shape: f32[1,128], index: 2, kind: input, shape index: {}]
  %s3 = inlined_call_operand.hbm [shape: f32[8,128], index: 3, kind: output, shape index: {}]
  %s4 = sld [smem:[#allocation0]]
  $region26: #{_linear_forward_padded.1} parent=0
    _
  %s6 = ssub.s32 1, %s4
  %s7 = scalar_select 0, %s6, %s4
  $region1: #{_linear_forward_padded.1} parent=0
    #allocation2 [shape = 'u8[65536]{0}', space=vmem, size = 0x10000, scoped, tag = 'input window, operand 1, single buffered']
    #allocation3 [shape = 's32[1]{0}', space=sflag, size = 0x4, scoped, tag = 'scoped memory for _linear_forward_padded.1']
    #allocation4 [shape = 's32[1]{0}', space=sflag, size = 0x4, scoped, tag = 'scoped memory for _linear_forward_padded.1']
    #allocation5 [shape = 'u8[4096]{0}', space=vmem, size = 0x1000, scoped, tag = 'output window, operand 0, single buffered']
    %8 = vsyncpa [#allocation3], 0
    %9 = vsyncpa [#allocation4], 0
    // Predicated region
    $region2: #{_linear_forward_padded.1} parent=1 // pred_check
      _
    $region3: #{_linear_forward_padded.1} parent=1 // pred_check_branch
      %11 = sbr.rel (0) target = $region5
    $region4: #{_linear_forward_padded.1} parent=1 // pred_region
      _
    $region5: #{_linear_forward_padded.1} parent=1 // pred_fallthru
      _
    // Predicated region
    $region6: #{_linear_forward_padded.1} parent=1 // pred_check
      _
    $region7: #{_linear_forward_padded.1} parent=1 // pred_check_branch
      %13 = sbr.rel (0) target = $region9
    $region8: #{_linear_forward_padded.1} parent=1 // pred_region
      %15 = vsyncadd [#allocation3], 0
      %s16 = sshll.u32 %s1, 4
      %s17 = int_to_ptr.hbm [resolvable:$true] %s16
      %s18 = sshll.u32 [#allocation2], 4
      %s19 = int_to_ptr.vmem [resolvable:$true] %s18
      %24 = dma.hbm_to_vmem [thread:$0]  %s17, 2048, %s19, [#allocation3], 128, 128, 8
    $region9: #{_linear_forward_padded.1} parent=1 // pred_fallthru
      _
    // Predicated region
    $region10: #{_linear_forward_padded.1} parent=1 // pred_check
      _
    $region11: #{_linear_forward_padded.1} parent=1 // pred_check_branch
      %26 = sbr.rel (0) target = $region13
    $region12: #{_linear_forward_padded.1} parent=1 // pred_region
      _
    $region13: #{_linear_forward_padded.1} parent=1 // pred_fallthru
      _
    // Predicated region
    $region14: #{_linear_forward_padded.1} parent=1 // pred_check
      _
    $region15: #{_linear_forward_padded.1} parent=1 // pred_check_branch
      %28 = sbr.rel (0) target = $region17
    $region16: #{_linear_forward_padded.1} parent=1 // pred_region
      %30 = dma.done [#allocation3], 2048
    $region17: #{_linear_forward_padded.1} parent=1 // pred_fallthru
      _
    %v31 = vld [vmem:[%s0] sm:$0xff]
    %v32 = vld [vmem:[#allocation2] sm:$0xff]
    %v33 = vld [vmem:[#allocation2 + $0x8] sm:$0xff]
    %v34 = vld [vmem:[#allocation2 + $0x10] sm:$0xff]
    %v35 = vld [vmem:[#allocation2 + $0x18] sm:$0xff]
    %v36 = vld [vmem:[#allocation2 + $0x20] sm:$0xff]
    %v37 = vld [vmem:[#allocation2 + $0x28] sm:$0xff]
    %v38 = vld [vmem:[#allocation2 + $0x30] sm:$0xff]
    %v39 = vld [vmem:[#allocation2 + $0x38] sm:$0xff]
    %v40 = vld [vmem:[#allocation2 + $0x40] sm:$0xff]
    %v41 = vld [vmem:[#allocation2 + $0x48] sm:$0xff]
    %v42 = vld [vmem:[#allocation2 + $0x50] sm:$0xff]
    %v43 = vld [vmem:[#allocation2 + $0x58] sm:$0xff]
    %v44 = vld [vmem:[#allocation2 + $0x60] sm:$0xff]
    %v45 = vld [vmem:[#allocation2 + $0x68] sm:$0xff]
    %v46 = vld [vmem:[#allocation2 + $0x70] sm:$0xff]
    %v47 = vld [vmem:[#allocation2 + $0x78] sm:$0xff]
    %v48 = vld [vmem:[%s2] sm:$0x1]
    %v50 = vperm.slane %v48, 0
    %52 = vmatpush.msra.mxu0 %v47
    %53 = vmatpush.msra.mxu0 %v46
    %54 = vmatpush.msra.mxu0 %v45
    %55 = vmatpush.msra.mxu0 %v44
    %56 = vmatpush.msra.mxu0 %v43
    %57 = vmatpush.msra.mxu0 %v42
    %58 = vmatpush.msra.mxu0 %v41
    %59 = vmatpush.msra.mxu0 %v40
    %60 = vmatpush.msra.mxu0 %v39
    %61 = vmatpush.msra.mxu0 %v38
    %62 = vmatpush.msra.mxu0 %v37
    %63 = vmatpush.msra.mxu0 %v36
    %64 = vmatpush.msra.mxu0 %v35
    %65 = vmatpush.msra.mxu0 %v34
    %66 = vmatpush.msra.mxu0 %v33
    %67 = vmatpush.msra.mxu0 %v32
    %68 = vmatmul.f32.gmra.mxu0 %v31
    %v69 = vpop.f32.mrf.mxu0
    %v70 = vadd.f32 %v50, %v69
    %71 = vdwg.mxu0
    %72 = vst [vmem:[#allocation5] sm:$0xff] %v70
    // Predicated region
    $region18: #{_linear_forward_padded.1} parent=1 // pred_check
      _
    $region19: #{_linear_forward_padded.1} parent=1 // pred_check_branch
      %74 = sbr.rel (0) target = $region21
    $region20: #{_linear_forward_padded.1} parent=1 // pred_region
      %76 = vsyncadd [#allocation4], 0
      %s78 = sshll.u32 [#allocation5], 4
      %s79 = int_to_ptr.vmem [resolvable:$true] %s78
      %s80 = sshll.u32 %s3, 4
      %s81 = int_to_ptr.hbm [resolvable:$true] %s80
      %83 = dma.vmem_to_hbm [thread:$0]  %s79, 128, %s81, [#allocation4]
    $region21: #{_linear_forward_padded.1} parent=1 // pred_fallthru
      _
    // Predicated region
    $region22: #{_linear_forward_padded.1} parent=1 // pred_check
      _
    $region23: #{_linear_forward_padded.1} parent=1 // pred_check_branch
      %85 = sbr.rel (0) target = $region25
    $region24: #{_linear_forward_padded.1} parent=1 // pred_region
      %87 = dma.done [#allocation4], 128
    $region25: #{_linear_forward_padded.1} parent=1 // pred_fallthru
      _
    %88 = vsyncpa [#allocation3], 1
    %89 = vsyncpa [#allocation4], 1

</llo_original>
